<compile_context>
chip_gen: v6e
topology: v6e:2x2x1
jax: 0.10.0
libtpu: 0.0.40
codegen_flags: <defaults>
</compile_context>

<pallas_src>
import functools

import numpy as np
import jax
import jax.numpy as jnp
from jax.experimental import pallas as pl
from jax.experimental.pallas import tpu as pltpu

LANE = 128
_LANE_CHOICES = (1024, 512, 256, 128)
_MIN_SPLIT_BYTES = 2 << 20        # only force a megacore split above this size
_DEFAULT_BLOCK_BYTES = 4 << 20    # 4 MiB blocks: good on v7x, fine on v5e/v6e


def _cdiv(a, b):
    return -(-a // b)


def _round_up(a, b):
    return _cdiv(a, b) * b


def _num_tensorcores():
    """TensorCores visible to one Pallas kernel (megacore parts). Best-effort."""
    try:
        kind = jax.devices()[0].device_kind.lower()
    except Exception:
        return 1
    if any(t in kind for t in ("lite", "v5e", "v6e", "v2", "v3")):
        return 1
    if any(t in kind for t in ("v4", "v5p", "v7")):
        return 2
    return 1


def _vmem_capacity_bytes():
    """Per-core VMEM capacity; conservative fallback (v7x) if the query fails."""
    try:
        return int(pltpu.get_tpu_info().vmem_capacity_bytes)
    except Exception:
        return 64 << 20


def _quantize_kernel(params_ref, x_ref, o_ref, *, lo, hi, midrise):
    """Elementwise fake-quantization hot path ('T'/'Q' modes)."""
    scale = params_ref[0]        # qmax / 2**ceil(lt)   (exact power of two)
    inv_scale = params_ref[1]    # 2**ceil(lt) / qmax   (exact power of two)
    s = x_ref[...] * scale
    if midrise:
        r = jnp.round(s - 0.5) + 0.5
    else:
        r = jnp.round(s)         # round-half-to-even == torch.round
    o_ref[...] = (jnp.clip(r, lo, hi) * inv_scale).astype(o_ref.dtype)


def _quantize_slab(x2, params, *, lo, hi, midrise, block_rows):
    """Run the Pallas kernel over a (rows, lane_width) slab; ragged last block OK."""
    rows, lane_width = x2.shape
    itemsize = jnp.dtype(x2.dtype).itemsize
    grid = (_cdiv(rows, block_rows),)

    block_bytes = block_rows * lane_width * itemsize
    # in + out, double-buffered = 4x block, plus headroom; bounded by device VMEM.
    vmem_limit = int(min(max(4 * block_bytes + (2 << 20), 16 << 20),
                         (_vmem_capacity_bytes() * 3) // 4))

    n = rows * lane_width
    kernel = functools.partial(_quantize_kernel, lo=lo, hi=hi, midrise=midrise)
    return pl.pallas_call(
        kernel,
        out_shape=jax.ShapeDtypeStruct((rows, lane_width), x2.dtype),
        grid=grid,
        in_specs=[
            pl.BlockSpec(memory_space=pltpu.MemorySpace.SMEM),          # [scale, inv_scale]
            pl.BlockSpec((block_rows, lane_width), lambda i: (i, 0)),   # x tile
        ],
        out_specs=pl.BlockSpec((block_rows, lane_width), lambda i: (i, 0)),
        compiler_params=pltpu.CompilerParams(
            dimension_semantics=("parallel",),
            vmem_limit_bytes=vmem_limit,
        ),
        cost_estimate=pl.CostEstimate(
            flops=5 * n, transcendentals=0, bytes_accessed=2 * n * itemsize),
    )(params, x2)


@functools.partial(
    jax.jit, static_argnames=("bits", "signed", "balanced", "target_block_bytes"))
def _quantize_pallas(x, lt, *, bits, signed, balanced, target_block_bytes):
    midrise = bool(signed and bits <= 2)
    qmax = float(2 ** (bits - 1)) if signed else float(2 ** bits)
    lo = (-qmax + float(balanced) + 0.5 * float(midrise)) if signed else 0.0
    hi = qmax - 1.0 + 0.5 * float(midrise)

    # Scalar scale / inv_scale computed once; exp2 gives bit-exact powers of two,
    # so the two in-kernel multiplies are exact.
    lt32 = jnp.asarray(lt, jnp.float32)
    t = jnp.exp2(jnp.ceil(lt32))
    scale = jnp.float32(qmax) / t
    inv_scale = t / jnp.float32(qmax)
    params = jnp.stack([scale, inv_scale])

    def quant_jnp(v):  # fused fallback for tiny / unaligned tails
        v32 = v.astype(jnp.float32) * scale
        r = jnp.round(v32 - 0.5) + 0.5 if midrise else jnp.round(v32)
        return (jnp.clip(r, lo, hi) * inv_scale).astype(v.dtype)

    orig_shape = x.shape
    flat = x.reshape(-1)
    n = flat.shape[0]
    itemsize = jnp.dtype(x.dtype).itemsize
    sublane = max(8, 32 // itemsize)          # dtype-aware: 8 f32 / 16 bf16 / 32 int8

    n_main = (n // LANE) * LANE
    if n_main == 0:
        # Tensor smaller than one lane row: not worth a kernel launch.
        return quant_jnp(flat).reshape(orig_shape)

    # Largest lane width dividing the aligned prefix -> no pad / slice HBM passes.
    lane_width = next(w for w in _LANE_CHOICES if n_main % w == 0)
    rows = n_main // lane_width

    # Block sizing: large contiguous blocks amortize the per-step overhead; on
    # megacore parts target >=4 grid steps so each TC keeps its DMAs pipelined.
    block_rows = max(
        sublane, (target_block_bytes // (lane_width * itemsize)) // sublane * sublane)
    total_bytes = rows * lane_width * itemsize
    if (_num_tensorcores() >= 2 and total_bytes >= _MIN_SPLIT_BYTES
            and rows >= 4 * sublane):
        block_rows = min(block_rows, _round_up(_cdiv(rows, 4), sublane))
    if block_rows >= rows:
        block_rows = rows                     # single full block (legal for any rows)

    x2 = flat[:n_main].reshape(rows, lane_width)
    out_main = _quantize_slab(
        x2, params, lo=lo, hi=hi, midrise=midrise, block_rows=block_rows).reshape(-1)

    if n_main == n:
        return out_main.reshape(orig_shape)
    # Ragged tail (< 128 elements): plain fused jnp, stitched back on.
    out_tail = quant_jnp(flat[n_main:])
    return jnp.concatenate([out_main, out_tail]).reshape(orig_shape)


def quantize_forward(x, lt, *, bits, signed, balanced=False, qmode="Q",
                     target_block_bytes=_DEFAULT_BLOCK_BYTES):
    """Forward of the Quantize module.  x: any shape (NCHW here), lt: scalar param."""
    if qmode in ("F", "C"):
        # Exact identity forward (the reference's `x + 0*lt` contributes nothing);
        # returning x avoids a full extra HBM read+write and NaN-from-lt edge cases.
        return x
    return _quantize_pallas(
        x, lt, bits=int(bits), signed=bool(signed), balanced=bool(balanced),
        target_block_bytes=int(target_block_bytes))


def calibrate_lt(lt, momentum=0.1):
    # Mirrors the 'C' branch of the reference: lt_cur is hard-coded to 3 there.
    # TODO(synk): the percentile-based lt_cur / self.hist / self.diag bookkeeping is
    # host-side scalar state in the PyTorch module, not a kernel; kept host-side too.
    lt_cur = 3.0
    return (1.0 - momentum) * jnp.asarray(lt, jnp.float32) + momentum * lt_cur


def _reference_quantize(x, lt, *, bits, signed, balanced=False):
    """Pure-JAX reference for correctness checking."""
    midrise = bool(signed and bits <= 2)
    qmax = float(2 ** (bits - 1)) if signed else float(2 ** bits)
    t = jnp.exp2(jnp.ceil(jnp.asarray(lt, jnp.float32)))
    s = x.astype(jnp.float32) * (qmax / t)
    rounded = jnp.round(s - 0.5) + 0.5 if midrise else jnp.round(s)
    lo = (-qmax + float(balanced) + 0.5 * float(midrise)) if signed else 0.0
    hi = qmax - 1.0 + 0.5 * float(midrise)
    return (jnp.clip(rounded, lo, hi) * (t / qmax)).astype(x.dtype)


if __name__ == "__main__":
    key = jax.random.PRNGKey(0)
    bits, signed, balanced = 4, True, False

    # Module parameter lt = nn.Parameter(torch.zeros([])) -> deterministic zero init.
    lt = jnp.zeros((), jnp.float32)

    # --- Phase 'C': calibration (forward is identity; lt update is scalar state).
    x = jax.random.normal(key, (2, 4, 16, 16), dtype=jnp.float32) * 2.0
    y_cal = quantize_forward(x, lt, bits=bits, signed=signed, balanced=balanced, qmode="C")
    np.testing.assert_array_equal(np.asarray(y_cal), np.asarray(x))
    lt = calibrate_lt(lt, momentum=0.1)

    # --- Phase 'Q': Pallas hot path, lane-aligned NCHW activation tensor.
    y = jax.block_until_ready(
        quantize_forward(x, lt, bits=bits, signed=signed, balanced=balanced, qmode="Q"))
    y_ref = _reference_quantize(x, lt, bits=bits, signed=signed, balanced=balanced)
    assert y.shape == x.shape and y.dtype == x.dtype
    np.testing.assert_allclose(np.asarray(y), np.asarray(y_ref), rtol=1e-6, atol=1e-6)

    # --- Ragged shape (n % 128 != 0): Pallas prefix + fused-jnp tail.
    key, sub = jax.random.split(key)
    x_r = jax.random.normal(sub, (2, 3, 5, 7), dtype=jnp.float32) * 4.0
    y_r = jax.block_until_ready(
        quantize_forward(x_r, lt, bits=bits, signed=signed, balanced=balanced, qmode="Q"))
    np.testing.assert_allclose(
        np.asarray(y_r),
        np.asarray(_reference_quantize(x_r, lt, bits=bits, signed=signed, balanced=balanced)),
        rtol=1e-6, atol=1e-6)

    # --- Multi-block path with a ragged (masked) last block: small block budget
    #     forces grid > 1 without rounding rows up / padding.
    key, sub = jax.random.split(key)
    x_m = jax.random.normal(sub, (2, 4, 24, 24), dtype=jnp.float32) * 3.0
    y_m = jax.block_until_ready(
        quantize_forward(x_m, lt, bits=bits, signed=signed, balanced=balanced,
                         qmode="Q", target_block_bytes=8192))
    np.testing.assert_allclose(
        np.asarray(y_m),
        np.asarray(_reference_quantize(x_m, lt, bits=bits, signed=signed, balanced=balanced)),
        rtol=1e-6, atol=1e-6)

    # --- bf16 activations (dtype-aware sublane alignment).
    key, sub = jax.random.split(key)
    x_b = (jax.random.normal(sub, (2, 4, 16, 16), dtype=jnp.float32) * 2.0).astype(jnp.bfloat16)
    y_b = jax.block_until_ready(
        quantize_forward(x_b, lt, bits=bits, signed=signed, balanced=balanced, qmode="Q"))
    np.testing.assert_allclose(
        np.asarray(y_b.astype(jnp.float32)),
        np.asarray(_reference_quantize(x_b, lt, bits=bits, signed=signed,
                                       balanced=balanced).astype(jnp.float32)),
        rtol=0, atol=1e-6)

    print("KERNEL_OK")
</pallas_src>

<mosaic_0001>
module attributes {stable_mosaic.version = 11 : i64} {
  func.func @_quantize_kernel(%arg0: i32, %arg1: memref<2xf32, #tpu.memory_space<smem>>, %arg2: memref<2x1024xf32, #tpu.memory_space<vmem>>, %arg3: memref<2x1024xf32, #tpu.memory_space<vmem>>) attributes {dimension_semantics = [#tpu.dimension_semantics<parallel>], iteration_bounds = array<i64: 1>, scalar_prefetch = 0 : i64, scratch_operands = 0 : i64, tpu.core_type = #tpu.core_type<tc>, window_params = [{transform_indices = @transform_0, window_bounds = array<i64: 2>}, {transform_indices = @transform_1, window_bounds = array<i64: 2, 1024>}, {transform_indices = @transform_2, window_bounds = array<i64: 2, 1024>}]} {
    %c0 = arith.constant 0 : index
    %0 = memref.load %arg1[%c0] : memref<2xf32, #tpu.memory_space<smem>>
    %c1 = arith.constant 1 : index
    %1 = memref.load %arg1[%c1] : memref<2xf32, #tpu.memory_space<smem>>
    %c0_0 = arith.constant 0 : index
    %c0_1 = arith.constant 0 : index
    %2 = vector.load %arg2[%c0_0, %c0_1] : memref<2x1024xf32, #tpu.memory_space<vmem>>, vector<2x1024xf32>
    %3 = vector.broadcast %0 : f32 to vector<2x1024xf32>
    %4 = arith.mulf %2, %3 : vector<2x1024xf32>
    %5 = math.roundeven %4 : vector<2x1024xf32>
    %cst = arith.constant -8.000000e+00 : f32
    %cst_2 = arith.constant 7.000000e+00 : f32
    %6 = vector.broadcast %cst : f32 to vector<2x1024xf32>
    %7 = arith.maximumf %6, %5 : vector<2x1024xf32>
    %8 = vector.broadcast %cst_2 : f32 to vector<2x1024xf32>
    %9 = arith.minimumf %8, %7 : vector<2x1024xf32>
    %10 = vector.broadcast %1 : f32 to vector<2x1024xf32>
    %11 = arith.mulf %9, %10 : vector<2x1024xf32>
    %c0_3 = arith.constant 0 : index
    %c0_4 = arith.constant 0 : index
    %12 = vector.load %arg3[%c0_3, %c0_4] : memref<2x1024xf32, #tpu.memory_space<vmem>>, vector<2x1024xf32>
    tpu.vector_store %arg3[%c0_3, %c0_4], %11 {strides = array<i32>} : memref<2x1024xf32, #tpu.memory_space<vmem>>, vector<2x1024xf32>,
    return
  }
  func.func @transform_0(%arg0: i32) -> i32 {
    %c0_i32 = arith.constant 0 : i32
    %c0_i32_0 = arith.constant 0 : i32
    return %c0_i32 : i32
  }
  func.func @transform_1(%arg0: i32) -> (i32, i32) {
    %c0_i32 = arith.constant 0 : i32
    %c0_i32_0 = arith.constant 0 : i32
    return %arg0, %c0_i32 : i32, i32
  }
  func.func @transform_2(%arg0: i32) -> (i32, i32) {
    %c0_i32 = arith.constant 0 : i32
    %c0_i32_0 = arith.constant 0 : i32
    return %arg0, %c0_i32 : i32, i32
  }
}

</mosaic_0001>

<llo_original>
// kernel: _quantize_pallas.1
$region0: #{_quantize_pallas.1}
  #allocation0 [shape = 'u32[]', space=smem, size = 0x4, offset = 0x4, fixed_abs, tag = 'smem constant byte address 0x4 - core index']
  #allocation1 [shape = 'u32[144,128]{1,0:T(1,128)}', space=vmem, size = 0x12000, scoped, tag = 'internal scratch']
  %s0 = inlined_call_operand.vmem [shape: f32[2], index: 0, kind: input, shape index: {}]
  %s1 = inlined_call_operand.vmem [shape: f32[2,1024], index: 1, kind: input, shape index: {}]
  %s2 = inlined_call_operand.vmem [shape: f32[2,1024], index: 2, kind: output, shape index: {}]
  %s3 = sld [smem:[#allocation0]]
  $region22: #{_quantize_pallas.1} parent=0
    _
  %s5 = ssub.s32 1, %s3
  %s6 = scalar_select 0, %s5, %s3
  $region1: #{_quantize_pallas.1} parent=0
    #allocation2 [shape = 'u8[512]{0}', space=smem, size = 0x200, scoped, tag = 'input window, operand 0, single buffered']
    #allocation3 [shape = 's32[1]{0}', space=sflag, size = 0x4, scoped, tag = 'scoped memory for _quantize_pallas.1']
    %7 = vsyncpa [#allocation3], 0
    // Predicated region
    $region2: #{_quantize_pallas.1} parent=1 // pred_check
      _
    $region3: #{_quantize_pallas.1} parent=1 // pred_check_branch
      %9 = sbr.rel (0) target = $region5
    $region4: #{_quantize_pallas.1} parent=1 // pred_region
      %s11 = ssub.s32 16, 16
      %12 = vsyncadd [#allocation3], %s11
      %s14 = sshll.u32 %s0, 4
      %s15 = int_to_ptr.vmem [resolvable:$true] %s14
      %17 = dma.vmem_to_smem %s15, 16, [#allocation2], [#allocation3]
    $region5: #{_quantize_pallas.1} parent=1 // pred_fallthru
      _
    // Predicated region
    $region6: #{_quantize_pallas.1} parent=1 // pred_check
      _
    $region7: #{_quantize_pallas.1} parent=1 // pred_check_branch
      %19 = sbr.rel (0) target = $region9
    $region8: #{_quantize_pallas.1} parent=1 // pred_region
      _
    $region9: #{_quantize_pallas.1} parent=1 // pred_fallthru
      _
    // Predicated region
    $region10: #{_quantize_pallas.1} parent=1 // pred_check
      _
    $region11: #{_quantize_pallas.1} parent=1 // pred_check_branch
      %21 = sbr.rel (0) target = $region13
    $region12: #{_quantize_pallas.1} parent=1 // pred_region
      %22 = dma.done [#allocation3], 16
    $region13: #{_quantize_pallas.1} parent=1 // pred_fallthru
      _
    %23 = sfence
    %s24 = sld [smem:[#allocation2]]
    %s25 = sld [smem:[#allocation2 + $0x1]]
    %v26 = vld [vmem:[%s1] sm:$0xff]
    %v27 = vld [vmem:[%s1 + $0x8] sm:$0xff]
    %v28 = vstv %s24
    %v29 = vmul.f32 %v26, %v28
    %v30 = vmul.f32 %v27, %v28
    %v31 = vround.ne.pseudo %v29
    %v32 = vround.ne.pseudo %v30
    %v33 = vmax.f32 %v31, -8.0
    %v34 = vmax.f32 %v32, -8.0
    %v35 = vmin.f32 %v33, 7.0
    %v36 = vmin.f32 %v34, 7.0
    %v37 = vstv %s25
    %v38 = vmul.f32 %v35, %v37
    %v39 = vmul.f32 %v36, %v37
    %40 = vst [vmem:[%s2] sm:$0xff] %v38
    %41 = vst [vmem:[%s2 + $0x8] sm:$0xff] %v39
    // Predicated region
    $region14: #{_quantize_pallas.1} parent=1 // pred_check
      _
    $region15: #{_quantize_pallas.1} parent=1 // pred_check_branch
      %43 = sbr.rel (0) target = $region17
    $region16: #{_quantize_pallas.1} parent=1 // pred_region
      _
    $region17: #{_quantize_pallas.1} parent=1 // pred_fallthru
      _
    // Predicated region
    $region18: #{_quantize_pallas.1} parent=1 // pred_check
      _
    $region19: #{_quantize_pallas.1} parent=1 // pred_check_branch
      %45 = sbr.rel (0) target = $region21
    $region20: #{_quantize_pallas.1} parent=1 // pred_region
      _
    $region21: #{_quantize_pallas.1} parent=1 // pred_fallthru
      _
    %46 = vsyncpa [#allocation3], 1

</llo_original>
